<compile_context>
chip_gen: v7x
topology: tpu7x:2x2x1
jax: 0.10.0
libtpu: 0.0.40
codegen_flags: <defaults>
</compile_context>

<pallas_src>
import functools

import jax
import jax.numpy as jnp
from jax.experimental import pallas as pl
from jax.experimental.pallas import tpu as pltpu


def _round_up(x, m):
    return ((x + m - 1) // m) * m


def _vmem_capacity_bytes():
    """Physical VMEM of the current TPU generation (fallback: 64 MiB)."""
    try:
        info = pltpu.get_tpu_info()
        cap = int(getattr(info, "vmem_capacity_bytes", 0) or 0)
        if cap > 0:
            return cap
    except Exception:
        pass
    return 64 * 1024 * 1024  # conservative (v7x-sized) fallback


def _losstry_kernel(logits1_ref, logits2_ref, labels_ref, psum_ref, *, n_total):
    """One batch tile: emit per-tile partial sums of (lse - correct_logit)."""
    i = pl.program_id(0)
    tn, c = logits1_ref.shape

    labels = labels_ref[...]                                       # (tn, 1) int32
    row = i * tn + jax.lax.broadcasted_iota(jnp.int32, (tn, 1), 0)
    valid = row < n_total                                          # mask padded rows
    col = jax.lax.broadcasted_iota(jnp.int32, (tn, c), 1)
    onehot = col == labels                                         # built once, reused by both branches

    def ce_partial_sum(x):
        x = x.astype(jnp.float32)                                  # f32 math (bf16 input ok)
        m = jnp.max(x, axis=-1, keepdims=True)                     # (tn, 1)
        lse = m + jnp.log(jnp.sum(jnp.exp(x - m), axis=-1, keepdims=True))
        correct = jnp.sum(jnp.where(onehot, x, 0.0), axis=-1, keepdims=True)
        # select (not multiply) so NaN/Inf from garbage padded rows can't leak
        return jnp.sum(jnp.where(valid, lse - correct, 0.0))       # scalar partial sum

    p1 = ce_partial_sum(logits1_ref[...])
    p2 = ce_partial_sum(logits2_ref[...])

    # Write this tile's two partial sums into its private (8,128) output block:
    # row 0 lane 0 -> branch 1, row 1 lane 0 -> branch 2, rest zeros.
    rid = jax.lax.broadcasted_iota(jnp.int32, psum_ref.shape, 0)
    psum_ref[...] = jnp.where(rid == 0, p1, jnp.where(rid == 1, p2, 0.0))


def losstry(logits, logits2, labels, epoch, *, block_rows=None):
    """Pallas implementation of Losstry.forward. Returns (loss, lce1, lce2).

    Prefer bf16 logits on v5e/v6e (kernel is HBM-bound there; math is f32
    in-kernel either way). `epoch` must be a trace-time Python scalar, exactly
    as in the PyTorch module.
    """
    n, c = logits.shape
    assert logits2.shape == (n, c)

    sup = float(min(0.005 * float(epoch) + 0.1, 0.5))
    labels2d = labels.astype(jnp.int32).reshape(n, 1)
    itemsize = jnp.dtype(logits.dtype).itemsize
    sub = 16 if itemsize < 4 else 8           # bf16 native sublane tile is 16
    cp = _round_up(c, 128)                    # lane-padded class dim actually in VMEM

    cap = _vmem_capacity_bytes()
    budget = cap // 2                         # ~64 MiB on v5e/v6e, ~32 MiB on v7x

    # Real per-row VMEM cost (bytes), including lane padding:
    row_bytes = (4 * cp * itemsize            # 2 logits inputs x 2 pipeline buffers
                 + 2 * 128 * 4                # labels (tn,1) int32 lane-pads to 128, x2 buffers
                 + 16 * cp                    # ~4 f32 (tn,cp) temporaries (upcast/exp/select/iota)
                 + 8 * 128 * 4)               # per-row (tn,1) f32 temporaries, lane padded

    if block_rows is None:
        budget_rows = max(1, budget // row_bytes)
        # Aim for >=2 tiles so a v7x "parallel" grid can feed both TensorCores.
        half = _round_up(pl.cdiv(n, 2), sub)
        block_rows = min(budget_rows, half) if n > sub else budget_rows

    tn = max(1, min(int(block_rows), n))
    if tn < n:
        tn = max((tn // sub) * sub, min(sub, n))   # keep sublane-aligned interior tiles
        if tn >= n:
            tn = n
    grid_n = int(pl.cdiv(n, tn))

    vmem_limit = int(min(cap, max(budget, 2 * tn * row_bytes)))

    kernel = functools.partial(_losstry_kernel, n_total=n)

    psums = pl.pallas_call(
        kernel,
        out_shape=jax.ShapeDtypeStruct((grid_n * 8, 128), jnp.float32),
        grid=(grid_n,),
        in_specs=[
            pl.BlockSpec((tn, c), lambda i: (i, 0)),   # logits  tile (tn, C)
            pl.BlockSpec((tn, c), lambda i: (i, 0)),   # logits2 tile (tn, C)
            pl.BlockSpec((tn, 1), lambda i: (i, 0)),   # labels  tile (tn, 1)
        ],
        out_specs=pl.BlockSpec((8, 128), lambda i: (i, 0)),  # per-tile partials
        compiler_params=pltpu.CompilerParams(
            dimension_semantics=("parallel",),          # independent tiles -> megacore-ready
            vmem_limit_bytes=vmem_limit),
        cost_estimate=pl.CostEstimate(
            flops=10 * n * c,
            transcendentals=2 * n * c,
            bytes_accessed=2 * n * c * itemsize + n * 4 + grid_n * 8 * 128 * 4),
    )(logits, logits2, labels2d)

    # Tiny JAX-side finish: mean over the batch and the sup mix.
    p = psums.reshape(grid_n, 8, 128)
    inv_n = 1.0 / n
    lce1 = jnp.sum(p[:, 0, 0]) * inv_n
    lce2 = jnp.sum(p[:, 1, 0]) * inv_n
    loss = (1.0 - sup) * lce1 + sup * lce2
    return loss, lce1, lce2


def _reference(logits, logits2, labels, epoch):
    """Pure-JAX reference for sanity checking."""
    def ce(x):
        x = x.astype(jnp.float32)
        lse = jax.scipy.special.logsumexp(x, axis=-1)
        correct = jnp.take_along_axis(x, labels[:, None], axis=-1)[:, 0]
        return jnp.mean(lse - correct)
    sup = min(0.005 * float(epoch) + 0.1, 0.5)
    l1, l2 = ce(logits), ce(logits2)
    return (1.0 - sup) * l1 + sup * l2, l1, l2


if __name__ == "__main__":
    N, C = 20, 32          # batch (deliberately not a multiple of the tile), classes
    epoch = 3

    key = jax.random.PRNGKey(0)
    k1, k2, k3 = jax.random.split(key, 3)
    logits = jax.random.normal(k1, (N, C), dtype=jnp.float32)
    logits2 = jax.random.normal(k2, (N, C), dtype=jnp.float32)
    labels = jax.random.randint(k3, (N,), 0, C, dtype=jnp.int32)

    ref_loss, ref_l1, ref_l2 = _reference(logits, logits2, labels, epoch)

    # 1) Auto-sized tiles (exercises the VMEM-aware sizer; splits into 2 tiles).
    loss, lce1, lce2 = losstry(logits, logits2, labels, epoch)
    jax.block_until_ready((loss, lce1, lce2))
    assert jnp.allclose(loss, ref_loss, atol=1e-5), (loss, ref_loss)
    assert jnp.allclose(lce1, ref_l1, atol=1e-5), (lce1, ref_l1)
    assert jnp.allclose(lce2, ref_l2, atol=1e-5), (lce2, ref_l2)

    # 2) Forced small tiles -> 3-tile grid with a masked partial final tile.
    loss, lce1, lce2 = losstry(logits, logits2, labels, epoch, block_rows=8)
    jax.block_until_ready((loss, lce1, lce2))
    assert jnp.allclose(loss, ref_loss, atol=1e-5), (loss, ref_loss)
    assert jnp.allclose(lce1, ref_l1, atol=1e-5), (lce1, ref_l1)
    assert jnp.allclose(lce2, ref_l2, atol=1e-5), (lce2, ref_l2)

    # 3) bf16 logits fast path (halves HBM bytes; f32 math in-kernel).
    lb, l1b, l2b = losstry(logits.astype(jnp.bfloat16),
                           logits2.astype(jnp.bfloat16),
                           labels, epoch)
    jax.block_until_ready((lb, l1b, l2b))
    rb, r1b, r2b = _reference(logits.astype(jnp.bfloat16),
                              logits2.astype(jnp.bfloat16), labels, epoch)
    assert jnp.allclose(lb, rb, atol=1e-3), (lb, rb)
    assert jnp.allclose(l1b, r1b, atol=1e-3), (l1b, r1b)
    assert jnp.allclose(l2b, r2b, atol=1e-3), (l2b, r2b)

    print("KERNEL_OK")
</pallas_src>

<mosaic_0001>
module attributes {stable_mosaic.version = 11 : i64} {
  func.func @_losstry_kernel(%arg0: i32, %arg1: memref<16x32xf32, #tpu.memory_space<vmem>>, %arg2: memref<16x32xf32, #tpu.memory_space<vmem>>, %arg3: memref<16x1xi32, #tpu.memory_space<vmem>>, %arg4: memref<8x128xf32, #tpu.memory_space<vmem>>) attributes {dimension_semantics = [#tpu.dimension_semantics<parallel>], iteration_bounds = array<i64: 2>, scalar_prefetch = 0 : i64, scratch_operands = 0 : i64, tpu.core_type = #tpu.core_type<tc>, window_params = [{transform_indices = @transform_0, window_bounds = array<i64: 16, 32>}, {transform_indices = @transform_1, window_bounds = array<i64: 16, 32>}, {transform_indices = @transform_2, window_bounds = array<i64: 16, 1>}, {transform_indices = @transform_3, window_bounds = array<i64: 8, 128>}]} {
    %c0 = arith.constant 0 : index
    %c0_0 = arith.constant 0 : index
    %0 = vector.load %arg3[%c0, %c0_0] : memref<16x1xi32, #tpu.memory_space<vmem>>, vector<16x1xi32>
    %c16_i32 = arith.constant 16 : i32
    %1 = arith.muli %arg0, %c16_i32 : i32
    %2 = tpu.iota {dimensions = array<i32: 0>} : vector<16x1xi32>
    %3 = vector.broadcast %1 : i32 to vector<16x1xi32>
    %4 = arith.addi %3, %2 : vector<16x1xi32>
    %c20_i32 = arith.constant 20 : i32
    %5 = vector.broadcast %c20_i32 : i32 to vector<16x1xi32>
    %6 = arith.cmpi slt, %4, %5 : vector<16x1xi32>
    %7 = tpu.iota {dimensions = array<i32: 1>} : vector<16x32xi32>
    %8 = vector.broadcast %0 : vector<16x1xi32> to vector<16x32xi32>
    %9 = arith.cmpi eq, %7, %8 : vector<16x32xi32>
    %c0_1 = arith.constant 0 : index
    %c0_2 = arith.constant 0 : index
    %10 = vector.load %arg1[%c0_1, %c0_2] : memref<16x32xf32, #tpu.memory_space<vmem>>, vector<16x32xf32>
    %cst = arith.constant dense<0xFF800000> : vector<16xf32>
    %11 = vector.multi_reduction <maximumf>, %10, %cst [1] : vector<16x32xf32> to vector<16xf32>
    %12 = vector.shape_cast %11 : vector<16xf32> to vector<16x1xf32>
    %13 = vector.broadcast %12 : vector<16x1xf32> to vector<16x32xf32>
    %14 = arith.subf %10, %13 : vector<16x32xf32>
    %15 = math.exp %14 : vector<16x32xf32>
    %cst_3 = arith.constant dense<0.000000e+00> : vector<16xf32>
    %16 = vector.multi_reduction <add>, %15, %cst_3 [1] : vector<16x32xf32> to vector<16xf32>
    %17 = vector.shape_cast %16 : vector<16xf32> to vector<16x1xf32>
    %18 = math.log %17 : vector<16x1xf32>
    %19 = arith.addf %12, %18 : vector<16x1xf32>
    %cst_4 = arith.constant 0.000000e+00 : f32
    %20 = vector.broadcast %cst_4 : f32 to vector<16x32xf32>
    %21 = arith.select %9, %10, %20 : vector<16x32xi1>, vector<16x32xf32>
    %cst_5 = arith.constant dense<0.000000e+00> : vector<16xf32>
    %22 = vector.multi_reduction <add>, %21, %cst_5 [1] : vector<16x32xf32> to vector<16xf32>
    %23 = vector.shape_cast %22 : vector<16xf32> to vector<16x1xf32>
    %24 = arith.subf %19, %23 : vector<16x1xf32>
    %cst_6 = arith.constant 0.000000e+00 : f32
    %25 = vector.broadcast %cst_6 : f32 to vector<16x1xf32>
    %26 = arith.select %6, %24, %25 : vector<16x1xi1>, vector<16x1xf32>
    %27 = vector.shape_cast %26 : vector<16x1xf32> to vector<1x16x1xf32>
    %cst_7 = arith.constant dense<0.000000e+00> : vector<1xf32>
    %28 = vector.multi_reduction <add>, %27, %cst_7 [1, 2] : vector<1x16x1xf32> to vector<1xf32>
    %29 = vector.shape_cast %28 : vector<1xf32> to vector<1x1x1xf32>
    %30 = vector.extract %29[0, 0, 0] : f32 from vector<1x1x1xf32>
    %c0_8 = arith.constant 0 : index
    %c0_9 = arith.constant 0 : index
    %31 = vector.load %arg2[%c0_8, %c0_9] : memref<16x32xf32, #tpu.memory_space<vmem>>, vector<16x32xf32>
    %cst_10 = arith.constant dense<0xFF800000> : vector<16xf32>
    %32 = vector.multi_reduction <maximumf>, %31, %cst_10 [1] : vector<16x32xf32> to vector<16xf32>
    %33 = vector.shape_cast %32 : vector<16xf32> to vector<16x1xf32>
    %34 = vector.broadcast %33 : vector<16x1xf32> to vector<16x32xf32>
    %35 = arith.subf %31, %34 : vector<16x32xf32>
    %36 = math.exp %35 : vector<16x32xf32>
    %cst_11 = arith.constant dense<0.000000e+00> : vector<16xf32>
    %37 = vector.multi_reduction <add>, %36, %cst_11 [1] : vector<16x32xf32> to vector<16xf32>
    %38 = vector.shape_cast %37 : vector<16xf32> to vector<16x1xf32>
    %39 = math.log %38 : vector<16x1xf32>
    %40 = arith.addf %33, %39 : vector<16x1xf32>
    %cst_12 = arith.constant 0.000000e+00 : f32
    %41 = vector.broadcast %cst_12 : f32 to vector<16x32xf32>
    %42 = arith.select %9, %31, %41 : vector<16x32xi1>, vector<16x32xf32>
    %cst_13 = arith.constant dense<0.000000e+00> : vector<16xf32>
    %43 = vector.multi_reduction <add>, %42, %cst_13 [1] : vector<16x32xf32> to vector<16xf32>
    %44 = vector.shape_cast %43 : vector<16xf32> to vector<16x1xf32>
    %45 = arith.subf %40, %44 : vector<16x1xf32>
    %cst_14 = arith.constant 0.000000e+00 : f32
    %46 = vector.broadcast %cst_14 : f32 to vector<16x1xf32>
    %47 = arith.select %6, %45, %46 : vector<16x1xi1>, vector<16x1xf32>
    %48 = vector.shape_cast %47 : vector<16x1xf32> to vector<1x16x1xf32>
    %cst_15 = arith.constant dense<0.000000e+00> : vector<1xf32>
    %49 = vector.multi_reduction <add>, %48, %cst_15 [1, 2] : vector<1x16x1xf32> to vector<1xf32>
    %50 = vector.shape_cast %49 : vector<1xf32> to vector<1x1x1xf32>
    %51 = vector.extract %50[0, 0, 0] : f32 from vector<1x1x1xf32>
    %52 = tpu.iota {dimensions = array<i32: 0>} : vector<8x128xi32>
    %c0_i32 = arith.constant 0 : i32
    %53 = vector.broadcast %c0_i32 : i32 to vector<8x128xi32>
    %54 = arith.cmpi eq, %52, %53 : vector<8x128xi32>
    %c1_i32 = arith.constant 1 : i32
    %55 = vector.broadcast %c1_i32 : i32 to vector<8x128xi32>
    %56 = arith.cmpi eq, %52, %55 : vector<8x128xi32>
    %cst_16 = arith.constant 0.000000e+00 : f32
    %57 = vector.broadcast %51 : f32 to vector<8x128xf32>
    %58 = vector.broadcast %cst_16 : f32 to vector<8x128xf32>
    %59 = arith.select %56, %57, %58 : vector<8x128xi1>, vector<8x128xf32>
    %60 = vector.broadcast %30 : f32 to vector<8x128xf32>
    %61 = arith.select %54, %60, %59 : vector<8x128xi1>, vector<8x128xf32>
    %c0_17 = arith.constant 0 : index
    %c0_18 = arith.constant 0 : index
    %62 = vector.load %arg4[%c0_17, %c0_18] : memref<8x128xf32, #tpu.memory_space<vmem>>, vector<8x128xf32>
    tpu.vector_store %arg4[%c0_17, %c0_18], %61 {strides = array<i32>} : memref<8x128xf32, #tpu.memory_space<vmem>>, vector<8x128xf32>,
    return
  }
  func.func @transform_0(%arg0: i32) -> (i32, i32) {
    %c0_i32 = arith.constant 0 : i32
    %c0_i32_0 = arith.constant 0 : i32
    return %arg0, %c0_i32 : i32, i32
  }
  func.func @transform_1(%arg0: i32) -> (i32, i32) {
    %c0_i32 = arith.constant 0 : i32
    %c0_i32_0 = arith.constant 0 : i32
    return %arg0, %c0_i32 : i32, i32
  }
  func.func @transform_2(%arg0: i32) -> (i32, i32) {
    %c0_i32 = arith.constant 0 : i32
    %c0_i32_0 = arith.constant 0 : i32
    return %arg0, %c0_i32 : i32, i32
  }
  func.func @transform_3(%arg0: i32) -> (i32, i32) {
    %c0_i32 = arith.constant 0 : i32
    %c0_i32_0 = arith.constant 0 : i32
    return %arg0, %c0_i32 : i32, i32
  }
}

</mosaic_0001>

<llo_original>
// kernel: tpu_custom_call.1
$region0: #{tpu_custom_call.1}
  #allocation0 [shape = 'u32[]', space=smem, size = 0x4, offset = 0x4, fixed_abs, tag = 'smem constant byte address 0x4 - core index']
  #allocation1 [shape = 'u32[144,128]{1,0:T(1,128)}', space=vmem, size = 0x12000, scoped, tag = 'internal scratch']
  %s0 = inlined_call_operand.vmem [shape: f32[20,32], index: 0, kind: input, shape index: {}]
  %s1 = inlined_call_operand.hbm [shape: f32[20,32], index: 1, kind: input, shape index: {}]
  %s2 = inlined_call_operand.vmem [shape: s32[20,1], index: 2, kind: input, shape index: {}]
  %s3 = inlined_call_operand.hbm [shape: f32[16,128], index: 3, kind: output, shape index: {}]
  %s4 = sld [smem:[#allocation0]]
  $region49: #{tpu_custom_call.1} parent=0
    _
  %s6 = ssub.s32 1, %s4
  %s7 = scalar_select 0, %s6, %s4
  $region1: #{tpu_custom_call.1} parent=0
    #allocation2 [shape = 'u8[16384]{0}', space=vmem, size = 0x4000, scoped, tag = 'input window, operand 1']
    #allocation3 [shape = 's32[2]{0}', space=sflag, size = 0x8, scoped, tag = 'scoped memory for tpu_custom_call.1']
    #allocation4 [shape = 's32[2]{0}', space=sflag, size = 0x8, scoped, tag = 'scoped memory for tpu_custom_call.1']
    #allocation5 [shape = 'u8[8192]{0}', space=vmem, size = 0x2000, scoped, tag = 'output window, operand 0']
    %8 = vsyncpa [#allocation3], 0
    %s9 = scalar_lea.sflag [#allocation3], 1
    %10 = vsyncpa %s9, 0
    %11 = vsyncpa [#allocation4], 0
    %s12 = scalar_lea.sflag [#allocation4], 1
    %13 = vsyncpa %s12, 0
    loop: start=0, step=1, limit=4
    $region2: #{tpu_custom_call.1} parent=1 // loop_pre_header
      _
    $region3: #{tpu_custom_call.1} parent=1 // loop_header
      %s15 = sphi 0, %s19
      %p16 = scmp.ge.s32.totalorder %s15, 4
      %s25 = sphi 0, %s27
      %s28 = sphi 0, %s25
      %s29 = sphi 0, %s28
      %s45 = sphi 0, %s29
      %s51 = sphi 0, %s53
      %s54 = sphi 0, %s51
      %s55 = sphi 0, %s54
      %s71 = sphi 0, %s55
      %s77 = sphi 0, %s79
      %s80 = sphi 0, %s77
      %s81 = sphi 0, %s80
      %s97 = sphi 0, %s81
      %s103 = sphi 0, %s105
      %s106 = sphi 0, %s103
      %s107 = sphi 0, %s106
      %s123 = sphi 0, %s107
    $region4: #{tpu_custom_call.1} parent=1 // loop_header_branch
      %18 = sbr.rel (%p16) target = $region8
    $region5: #{tpu_custom_call.1} parent=1 // loop_body
      %s20 = ssub.s32 %s15, 1
      %s21 = ssub.s32 %s15, 2
      %s22 = sadd.s32 %s15, 1
      %s23 = ssub.s32 %s15, %s22
      %p24 = scmp.eq.s32.totalorder %s23, 0
      %s26 = sadd.s32 %s25, 1
      %s27 = scalar_select %p24, %s25, %s26
      %p30 = pneg %p24
      %p31 = scmp.eq.s32.totalorder %s15, 1
      %p32 = por %p30, %p31
      %p33 = scmp.ne.s32.totalorder %s25, %s28
      %p34 = scmp.eq.s32.totalorder %s15, 0
      %p35 = por %p33, %p34
      %p36 = scmp.ne.s32.totalorder %s25, %s28
      %p37 = scmp.eq.s32.totalorder %s20, 1
      %p38 = por %p36, %p37
      %p39 = scmp.ne.s32.totalorder %s28, %s29
      %p40 = scmp.eq.s32.totalorder %s20, 0
      %p41 = por %p39, %p40
      %p42 = scmp.ne.s32.totalorder %s28, %s29
      %p43 = scmp.eq.s32.totalorder %s21, 1
      %p44 = por %p42, %p43
      %p46 = scmp.ne.s32.totalorder %s29, %s45
      %p47 = scmp.eq.s32.totalorder %s21, 0
      %p48 = por %p46, %p47
      %s49 = ssub.s32 %s15, %s22
      %p50 = scmp.eq.s32.totalorder %s49, 0
      %s52 = sadd.s32 %s51, 1
      %s53 = scalar_select %p50, %s51, %s52
      %p56 = pneg %p50
      %p57 = scmp.eq.s32.totalorder %s15, 1
      %p58 = por %p56, %p57
      %p59 = scmp.ne.s32.totalorder %s51, %s54
      %p60 = scmp.eq.s32.totalorder %s15, 0
      %p61 = por %p59, %p60
      %p62 = scmp.ne.s32.totalorder %s51, %s54
      %p63 = scmp.eq.s32.totalorder %s20, 1
      %p64 = por %p62, %p63
      %p65 = scmp.ne.s32.totalorder %s54, %s55
      %p66 = scmp.eq.s32.totalorder %s20, 0
      %p67 = por %p65, %p66
      %p68 = scmp.ne.s32.totalorder %s54, %s55
      %p69 = scmp.eq.s32.totalorder %s21, 1
      %p70 = por %p68, %p69
      %p72 = scmp.ne.s32.totalorder %s55, %s71
      %p73 = scmp.eq.s32.totalorder %s21, 0
      %p74 = por %p72, %p73
      %s75 = ssub.s32 %s15, %s22
      %p76 = scmp.eq.s32.totalorder %s75, 0
      %s78 = sadd.s32 %s77, 1
      %s79 = scalar_select %p76, %s77, %s78
      %p82 = pneg %p76
      %p83 = scmp.eq.s32.totalorder %s15, 1
      %p84 = por %p82, %p83
      %p85 = scmp.ne.s32.totalorder %s77, %s80
      %p86 = scmp.eq.s32.totalorder %s15, 0
      %p87 = por %p85, %p86
      %p88 = scmp.ne.s32.totalorder %s77, %s80
      %p89 = scmp.eq.s32.totalorder %s20, 1
      %p90 = por %p88, %p89
      %p91 = scmp.ne.s32.totalorder %s80, %s81
      %p92 = scmp.eq.s32.totalorder %s20, 0
      %p93 = por %p91, %p92
      %p94 = scmp.ne.s32.totalorder %s80, %s81
      %p95 = scmp.eq.s32.totalorder %s21, 1
      %p96 = por %p94, %p95
      %p98 = scmp.ne.s32.totalorder %s81, %s97
      %p99 = scmp.eq.s32.totalorder %s21, 0
      %p100 = por %p98, %p99
      %s101 = ssub.s32 %s15, %s22
      %p102 = scmp.eq.s32.totalorder %s101, 0
      %s104 = sadd.s32 %s103, 1
      %s105 = scalar_select %p102, %s103, %s104
      %p108 = pneg %p102
      %p109 = scmp.eq.s32.totalorder %s15, 1
      %p110 = por %p108, %p109
      %p111 = scmp.ne.s32.totalorder %s103, %s106
      %p112 = scmp.eq.s32.totalorder %s15, 0
      %p113 = por %p111, %p112
      %p114 = scmp.ne.s32.totalorder %s103, %s106
      %p115 = scmp.eq.s32.totalorder %s20, 1
      %p116 = por %p114, %p115
      %p117 = scmp.ne.s32.totalorder %s106, %s107
      %p118 = scmp.eq.s32.totalorder %s20, 0
      %p119 = por %p117, %p118
      %p120 = scmp.ne.s32.totalorder %s106, %s107
      %p121 = scmp.eq.s32.totalorder %s21, 1
      %p122 = por %p120, %p121
      %p124 = scmp.ne.s32.totalorder %s107, %s123
      %p125 = scmp.eq.s32.totalorder %s21, 0
      %p126 = por %p124, %p125
      %p127 = scmp.le.s32.totalorder 1, %s15
      %p128 = scmp.lt.s32.totalorder %s15, 3
      %p129 = pnand %p127, %p128
      %p130 = pneg %p129
      // Predicated region
      $region9: #{tpu_custom_call.1} parent=5 // pred_check
        _
      $region10: #{tpu_custom_call.1} parent=5 // pred_check_branch
        %132 = sbr.rel (%p129) target = $region12
      $region11: #{tpu_custom_call.1} parent=5 // pred_region
        %s133 = ssub.s32 %s15, 1
      $region12: #{tpu_custom_call.1} parent=5 // pred_fallthru
        _
      %p134 = scmp.lt.s32.totalorder %s15, 2
      // Predicated region
      $region13: #{tpu_custom_call.1} parent=5 // pred_check
        %p135 = pneg %p134
      $region14: #{tpu_custom_call.1} parent=5 // pred_check_branch
        %137 = sbr.rel (%p135) target = $region16
      $region15: #{tpu_custom_call.1} parent=5 // pred_region
        // Predicated region
        $region17: #{tpu_custom_call.1} parent=15 // pred_check
          %p138 = pneg %p35
        $region18: #{tpu_custom_call.1} parent=15 // pred_check_branch
          %140 = sbr.rel (%p138) target = $region20
        $region19: #{tpu_custom_call.1} parent=15 // pred_region
          %s141 = smul.u32 2, %s15
          %s142 = ssub.s32 3, %s141
          %p143 = scmp.lt.s32.totalorder %s142, 2
          %s144 = scalar_select %p143, %s142, 2
          %s145 = smul.u32 128, %s144
          %p146 = scmp.lt.s32.totalorder %s141, 2
          %s147 = scalar_select %p146, %s141, 2
          %s148 = smul.addr %s147, 8
          %s149 = scalar_lea.vmem %s0, %s148
          %s150 = smul.u32 2, %s15
          %s151 = ssub.s32 3, %s150
          %p152 = scmp.lt.s32.totalorder %s151, 2
          %s153 = scalar_select %p152, %s151, 2
          %s154 = smul.u32 128, %s153
        $region20: #{tpu_custom_call.1} parent=15 // pred_fallthru
          _
        // Predicated region
        $region21: #{tpu_custom_call.1} parent=15 // pred_check
          %p155 = pneg %p61
        $region22: #{tpu_custom_call.1} parent=15 // pred_check_branch
          %157 = sbr.rel (%p155) target = $region24
        $region23: #{tpu_custom_call.1} parent=15 // pred_region
          %s158 = sand.u32 %s51, 1
          %s159 = scalar_lea.sflag [#allocation3], %s158
          %s160 = sand.u32 %s51, 1
          %s161 = smul.addr %s160, 16
          %s162 = scalar_lea.vmem [#allocation2], %s161
          %s163 = smul.u32 2, %s15
          %s164 = ssub.s32 3, %s163
          %p165 = scmp.lt.s32.totalorder %s164, 2
          %s166 = scalar_select %p165, %s164, 2
          %s167 = smul.u32 128, %s166
          %s169 = ssub.s32 256, %s167
          %170 = vsyncadd %s159, %s169
          %p171 = scmp.ne.s32.totalorder 0, %s167
          %s172 = smul.addr %s163, 128
          %s173 = scalar_lea.hbm %s1, %s172
          %s174 = smul.u32 8, %s166
          %s175 = sshll.u32 %s162, 4
          %s176 = int_to_ptr.vmem [resolvable:$true] %s175
          %s177 = sshll.u32 %s174, 4
          %181 = dma.hbm_to_vmem [thread:$0]  (%p171), %s173, %s177, %s176, %s159, 128, 128, 8
        $region24: #{tpu_custom_call.1} parent=15 // pred_fallthru
          _
        // Predicated region
        $region25: #{tpu_custom_call.1} parent=15 // pred_check
          %p182 = pneg %p87
        $region26: #{tpu_custom_call.1} parent=15 // pred_check_branch
          %184 = sbr.rel (%p182) target = $region28
        $region27: #{tpu_custom_call.1} parent=15 // pred_region
          %s185 = smul.u32 2, %s15
          %s186 = ssub.s32 3, %s185
          %p187 = scmp.lt.s32.totalorder %s186, 2
          %s188 = scalar_select %p187, %s186, 2
          %s189 = smul.u32 128, %s188
          %p190 = scmp.lt.s32.totalorder %s185, 2
          %s191 = scalar_select %p190, %s185, 2
          %s192 = smul.addr %s191, 8
          %s193 = scalar_lea.vmem %s2, %s192
          %s194 = smul.u32 2, %s15
          %s195 = ssub.s32 3, %s194
          %p196 = scmp.lt.s32.totalorder %s195, 2
          %s197 = scalar_select %p196, %s195, 2
          %s198 = smul.u32 128, %s197
        $region28: #{tpu_custom_call.1} parent=15 // pred_fallthru
          _
      $region16: #{tpu_custom_call.1} parent=5 // pred_fallthru
        _
      %p199 = scmp.le.s32.totalorder 1, %s15
      %p200 = scmp.lt.s32.totalorder %s15, 3
      %p201 = pnand %p199, %p200
      %p202 = pneg %p201
      // Predicated region
      $region29: #{tpu_custom_call.1} parent=5 // pred_check
        _
      $region30: #{tpu_custom_call.1} parent=5 // pred_check_branch
        %204 = sbr.rel (%p201) target = $region32
      $region31: #{tpu_custom_call.1} parent=5 // pred_region
        %s205 = ssub.s32 %s15, 1
        %s206 = sand.u32 %s54, 1
        %s207 = scalar_lea.sflag [#allocation3], %s206
        %s208 = sand.u32 %s54, 1
        %s209 = smul.addr %s208, 16
        %s210 = scalar_lea.vmem [#allocation2], %s209
        // Predicated region
        $region33: #{tpu_custom_call.1} parent=31 // pred_check
          %p211 = pneg %p67
        $region34: #{tpu_custom_call.1} parent=31 // pred_check_branch
          %213 = sbr.rel (%p211) target = $region36
        $region35: #{tpu_custom_call.1} parent=31 // pred_region
          %214 = dma.done %s207, 256
        $region36: #{tpu_custom_call.1} parent=31 // pred_fallthru
          _
        %s215 = smul.u32 2, %s20
        %s216 = ssub.s32 3, %s215
        %p217 = scmp.lt.s32.totalorder %s216, 2
        %s218 = scalar_select %p217, %s216, 2
        %s219 = smul.u32 128, %s218
        %p220 = scmp.lt.s32.totalorder %s215, 2
        %s221 = scalar_select %p220, %s215, 2
        %s222 = smul.addr %s221, 8
        %s223 = scalar_lea.vmem %s0, %s222
        %p224 = pneg %p41
        %p225 = pneg %p38
        %s226 = sand.u32 %s54, 1
        %s227 = scalar_lea.sflag [#allocation3], %s226
        %s228 = sand.u32 %s54, 1
        %s229 = smul.addr %s228, 16
        %s230 = scalar_lea.vmem [#allocation2], %s229
        %p231 = pneg %p67
        %p232 = pneg %p64
        %s233 = smul.u32 2, %s20
        %s234 = ssub.s32 3, %s233
        %p235 = scmp.lt.s32.totalorder %s234, 2
        %s236 = scalar_select %p235, %s234, 2
        %s237 = smul.u32 128, %s236
        %p238 = scmp.lt.s32.totalorder %s233, 2
        %s239 = scalar_select %p238, %s233, 2
        %s240 = smul.addr %s239, 8
        %s241 = scalar_lea.vmem %s2, %s240
        %p242 = pneg %p93
        %p243 = pneg %p90
        %p244 = pneg %p119
        %p245 = pneg %p116
        %s246 = sand.u32 %s106, 1
        %s247 = scalar_lea.sflag [#allocation4], %s246
        %s248 = sand.u32 %s106, 1
        %s249 = smul.addr %s248, 8
        %s250 = scalar_lea.vmem [#allocation5], %s249
        %s251 = smul.u32 2, %s20
        %s252 = ssub.s32 3, %s251
        %p253 = scmp.lt.s32.totalorder %s252, 2
        %s254 = scalar_select %p253, %s252, 2
        %s255 = smul.u32 128, %s254
        %p256 = scmp.lt.s32.totalorder %s251, 2
        %s257 = scalar_select %p256, %s251, 2
        %s258 = smul.addr %s257, 8
        %s259 = scalar_lea.vmem %s0, %s258
        %s260 = smul.u32 2, %s20
        %s261 = ssub.s32 3, %s260
        %p262 = scmp.lt.s32.totalorder %s261, 2
        %s263 = scalar_select %p262, %s261, 2
        %s264 = smul.u32 128, %s263
        %s265 = smul.u32 2, %s20
        %s266 = ssub.s32 3, %s265
        %p267 = scmp.lt.s32.totalorder %s266, 2
        %s268 = scalar_select %p267, %s266, 2
        %s269 = smul.u32 128, %s268
        %s270 = smul.u32 2, %s20
        %s271 = ssub.s32 3, %s270
        %p272 = scmp.lt.s32.totalorder %s271, 2
        %s273 = scalar_select %p272, %s271, 2
        %s274 = smul.u32 128, %s273
        %p275 = scmp.lt.s32.totalorder %s270, 2
        %s276 = scalar_select %p275, %s270, 2
        %s277 = smul.addr %s276, 8
        %s278 = scalar_lea.vmem %s2, %s277
        %s279 = smul.u32 2, %s20
        %s280 = ssub.s32 3, %s279
        %p281 = scmp.lt.s32.totalorder %s280, 2
        %s282 = scalar_select %p281, %s280, 2
        %s283 = smul.u32 128, %s282
        %v284 = vld [vmem:[%s278] sm:$0xff]
        %v285 = vld [vmem:[%s278 + $0x8] sm:$0xff]
        %s286 = smul.u32 %s20, 16
        %v287 = vlaneseq
        %v288 = vshrl.u32 %v287, 7
        %v289 = vadd.s32 %v288, 8
        %v290 = vstv %s286
        %v291 = vadd.s32 %v290, %v288
        %v292 = vadd.s32 %v290, %v289
        %vm293 = vcmp.lt.s32.totalorder %v291, 20
        %vm294 = vcmp.lt.s32.totalorder %v292, 20
        %v295 = vlaneseq
        %v296 = vand.u32 %v295, 127
        %297 = vset.pattern.permute.xlu0 0
        %298 = vperm.xlu0 %297, %v284
        %v299 = vpop.permute.xlu0 %298
        %300 = vset.pattern.permute.xlu0 0
        %301 = vperm.xlu0 %300, %v285
        %v302 = vpop.permute.xlu0 %301
        %vm303 = vcmp.eq.s32.totalorder %v296, %v299
        %vm304 = vcmp.eq.s32.totalorder %v296, %v302
        %v305 = vld [vmem:[%s259] sm:$0xff]
        %v306 = vld [vmem:[%s259 + $0x8] sm:$0xff]
        %vm307 = vcmask 261120
        %v308 = vsel %vm307, %v305, -inf
        %309 = vmax.xlane.f32.xlu0 %v308
        %v310 = vpop.xlane.xlu0 %309
        %v311 = vsel %vm307, %v306, -inf
        %312 = vmax.xlane.f32.xlu0 %v311
        %v313 = vpop.xlane.xlu0 %312
        %v314 = vsub.f32 %v305, %v310
        %v315 = vsub.f32 %v306, %v313
        %v316 = vmul.f32 %v314, 1.442695
        %v317 = vpow.pop %v316
        %v318 = vmul.f32 %v315, 1.442695
        %v319 = vpow.pop %v318
        %v320 = vsel %vm307, %v317, 0.0
        %321 = vadd.xlane.f32.xlu0 %v320
        %v322 = vpop.xlane.xlu0 %321
        %v323 = vsel %vm307, %v319, 0.0
        %324 = vadd.xlane.f32.xlu0 %v323
        %v325 = vpop.xlane.xlu0 %324
        %v326 = vlog2.pop %v322
        %v327 = vmul.f32 %v326, 0.6931472
        %v328 = vlog2.pop %v325
        %v329 = vmul.f32 %v328, 0.6931472
        %v330 = vadd.f32 %v310, %v327
        %v331 = vadd.f32 %v313, %v329
        %v332 = vsel %vm303, %v305, 0.0
        %v333 = vsel %vm304, %v306, 0.0
        %v334 = vsel %vm307, %v332, 0.0
        %335 = vadd.xlane.f32.xlu0 %v334
        %v336 = vpop.xlane.xlu0 %335
        %v337 = vsel %vm307, %v333, 0.0
        %338 = vadd.xlane.f32.xlu0 %v337
        %v339 = vpop.xlane.xlu0 %338
        %v340 = vsub.f32 %v330, %v336
        %v341 = vsub.f32 %v331, %v339
        %v342 = vsel %vm293, %v340, 0.0
        %v343 = vsel %vm294, %v341, 0.0
        %vm344 = vcmask 7168
        %v345 = vsel %vm344, %v342, 0.0
        %v346 = vsel %vm344, %v343, 0.0
        %v347 = vadd.f32 %v345, %v346
        %348 = vadd.xlane.f32.xlu0 %v347
        %v349 = vpop.xlane.xlu0 %348
        %v350 = vrot.slane %v349, 4
        %v351 = vadd.f32 %v349, %v350
        %v352 = vrot.slane %v351, 2
        %v353 = vadd.f32 %v351, %v352
        %v354 = vrot.slane %v353, 1
        %v355 = vadd.f32 %v353, %v354
        %s356 = vtos %v355
        %v357 = vld [vmem:[%s210] sm:$0xff]
        %v358 = vld [vmem:[%s210 + $0x8] sm:$0xff]
        %v359 = vsel %vm307, %v357, -inf
        %360 = vmax.xlane.f32.xlu0 %v359
        %v361 = vpop.xlane.xlu0 %360
        %v362 = vsel %vm307, %v358, -inf
        %363 = vmax.xlane.f32.xlu0 %v362
        %v364 = vpop.xlane.xlu0 %363
        %v365 = vsub.f32 %v357, %v361
        %v366 = vsub.f32 %v358, %v364
        %v367 = vmul.f32 %v365, 1.442695
        %v368 = vpow.pop %v367
        %v369 = vmul.f32 %v366, 1.442695
        %v370 = vpow.pop %v369
        %v371 = vsel %vm307, %v368, 0.0
        %372 = vadd.xlane.f32.xlu0 %v371
        %v373 = vpop.xlane.xlu0 %372
        %v374 = vsel %vm307, %v370, 0.0
        %375 = vadd.xlane.f32.xlu0 %v374
        %v376 = vpop.xlane.xlu0 %375
        %v377 = vlog2.pop %v373
        %v378 = vmul.f32 %v377, 0.6931472
        %v379 = vlog2.pop %v376
        %v380 = vmul.f32 %v379, 0.6931472
        %v381 = vadd.f32 %v361, %v378
        %v382 = vadd.f32 %v364, %v380
        %v383 = vsel %vm303, %v357, 0.0
        %v384 = vsel %vm304, %v358, 0.0
        %v385 = vsel %vm307, %v383, 0.0
        %386 = vadd.xlane.f32.xlu0 %v385
        %v387 = vpop.xlane.xlu0 %386
        %v388 = vsel %vm307, %v384, 0.0
        %389 = vadd.xlane.f32.xlu0 %v388
        %v390 = vpop.xlane.xlu0 %389
        %v391 = vsub.f32 %v381, %v387
        %v392 = vsub.f32 %v382, %v390
        %v393 = vsel %vm293, %v391, 0.0
        %v394 = vsel %vm294, %v392, 0.0
        %v395 = vsel %vm344, %v393, 0.0
        %v396 = vsel %vm344, %v394, 0.0
        %v397 = vadd.f32 %v395, %v396
        %398 = vadd.xlane.f32.xlu0 %v397
        %v399 = vpop.xlane.xlu0 %398
        %v400 = vrot.slane %v399, 4
        %v401 = vadd.f32 %v399, %v400
        %v402 = vrot.slane %v401, 2
        %v403 = vadd.f32 %v401, %v402
        %v404 = vrot.slane %v403, 1
        %v405 = vadd.f32 %v403, %v404
        %s406 = vtos %v405
        %vm407 = vcmp.eq.s32.totalorder %v288, 0
        %vm408 = vcmp.eq.s32.totalorder %v288, 1
        %v409 = vstv %s406
        %v410 = vsel %vm408, %v409, 0.0
        %v411 = vstv %s356
        %v412 = vsel %vm407, %v411, %v410
        %413 = vst [vmem:[%s250] sm:$0xff] %v412
        %s414 = sand.u32 %s106, 1
        %s415 = scalar_lea.sflag [#allocation4], %s414
        %s416 = sand.u32 %s106, 1
        %s417 = smul.addr %s416, 8
        %s418 = scalar_lea.vmem [#allocation5], %s417
        // Predicated region
        $region37: #{tpu_custom_call.1} parent=31 // pred_check
          %p419 = pneg %p116
        $region38: #{tpu_custom_call.1} parent=31 // pred_check_branch
          %421 = sbr.rel (%p419) target = $region40
        $region39: #{tpu_custom_call.1} parent=31 // pred_region
          %s423 = ssub.s32 128, 128
          %424 = vsyncadd %s415, %s423
          %s425 = smul.addr %s20, 128
          %s426 = scalar_lea.hbm %s3, %s425
          %s428 = sshll.u32 %s418, 4
          %s429 = int_to_ptr.vmem [resolvable:$true] %s428
          %431 = dma.vmem_to_hbm [thread:$0]  %s429, 128, %s426, %s415
        $region40: #{tpu_custom_call.1} parent=31 // pred_fallthru
          _
      $region32: #{tpu_custom_call.1} parent=5 // pred_fallthru
        _
      %p432 = scmp.le.s32.totalorder 2, %s15
      // Predicated region
      $region41: #{tpu_custom_call.1} parent=5 // pred_check
        %p433 = pneg %p432
      $region42: #{tpu_custom_call.1} parent=5 // pred_check_branch
        %435 = sbr.rel (%p433) target = $region44
      $region43: #{tpu_custom_call.1} parent=5 // pred_region
        %s436 = ssub.s32 %s15, 2
        // Predicated region
        $region45: #{tpu_custom_call.1} parent=43 // pred_check
          %p437 = pneg %p122
        $region46: #{tpu_custom_call.1} parent=43 // pred_check_branch
          %439 = sbr.rel (%p437) target = $region48
        $region47: #{tpu_custom_call.1} parent=43 // pred_region
          %s440 = sand.u32 %s107, 1
          %s441 = scalar_lea.sflag [#allocation4], %s440
          %s442 = sand.u32 %s107, 1
          %s443 = smul.addr %s442, 8
          %s444 = scalar_lea.vmem [#allocation5], %s443
          %445 = dma.done %s441, 128
        $region48: #{tpu_custom_call.1} parent=43 // pred_fallthru
          _
      $region44: #{tpu_custom_call.1} parent=5 // pred_fallthru
        _
    $region6: #{tpu_custom_call.1} parent=1 // loop_footer
      %s19 = sadd.s32 1, %s15
    $region7: #{tpu_custom_call.1} parent=1 // loop_footer_branch
      %14 = sbr.rel target = $region3
    $region8: #{tpu_custom_call.1} parent=1 // loop_exit
      _
    %446 = vsyncpa [#allocation3], 1
    %s447 = scalar_lea.sflag [#allocation3], 1
    %448 = vsyncpa %s447, 1
    %449 = vsyncpa [#allocation4], 1
    %s450 = scalar_lea.sflag [#allocation4], 1
    %451 = vsyncpa %s450, 1

</llo_original>
